<compile_context>
chip_gen: v5e
topology: v5e:2x2
jax: 0.10.0
libtpu: 0.0.40
codegen_flags: <defaults>
</compile_context>

<pallas_src>
import jax
import jax.numpy as jnp
from jax import lax
from jax.experimental import pallas as pl
from jax.experimental.pallas import tpu as pltpu

# small synthetic shapes
N = 64        # number of graph nodes
F_DIM = 32    # dim_feats
H_DIM = 32    # dim_h
Z_DIM = 16    # dim_z
C_DIM = 8     # n_classes
EPS = 1.1920929e-07   # torch.finfo(float32).eps  (torch clamp_probs)
PACK_W = 128          # lane width of the packed parameter / output slabs


def _gaug_kernel(adj_ref, fn_ref, par_ref, out_ref):
    f32 = jnp.float32
    n = adj_ref.shape[0]
    adj = adj_ref[...]
    fn = fn_ref[...]      # (N, F + 2Z + N) = [features | g1 | g2 | u2_sym]
    par = par_ref[...]    # (F + 2H + 2, 128) parameter slab

    # --- static slices of the two input slabs (layout plumbing, no compute) ---
    x = fn[:, 0:F_DIM]                                        # (N, F)
    g1 = fn[:, F_DIM:F_DIM + Z_DIM]                           # (N, Z)
    g2 = fn[:, F_DIM + Z_DIM:F_DIM + 2 * Z_DIM]               # (N, Z)
    u2 = fn[:, F_DIM + 2 * Z_DIM:F_DIM + 2 * Z_DIM + n]       # (N, N), symmetric

    wbw1 = par[0:F_DIM, 0:2 * H_DIM]                          # [w_base | w1]   (F, 2H)
    wms = par[F_DIM:F_DIM + H_DIM, 0:2 * Z_DIM]               # [w_mean|w_logstd] (H, 2Z)
    w2p = par[F_DIM + H_DIM:F_DIM + 2 * H_DIM, :]             # w2 at lanes [n, n+C) (H, 128)
    b1 = par[F_DIM + 2 * H_DIM:F_DIM + 2 * H_DIM + 1, 0:H_DIM]        # (1, H)
    b2p = par[F_DIM + 2 * H_DIM + 1:F_DIM + 2 * H_DIM + 2, :]         # (1, 128)

    row = lax.broadcasted_iota(jnp.int32, (n, n), 0)
    col = lax.broadcasted_iota(jnp.int32, (n, n), 1)
    eye = (col == row).astype(f32)

    def mm(a, b):
        return jnp.dot(a, b, preferred_element_type=f32)

    def zzT(z):  # z @ z.T without an explicit transpose (contract dim 1 vs 1)
        return lax.dot_general(z, z, (((1,), (1,)), ((), ())),
                               preferred_element_type=f32)

    def clamp_probs(p):
        return jnp.clip(p, EPS, 1.0 - EPS)

    # x-side projections fused into one MXU call:  x @ [w_base | w1] -> (N, 2H)
    xp = mm(x, wbw1)
    xwb = xp[:, :H_DIM]      # VGAE gcn_base : x @ w_base   (shared by both ep_net calls)
    xw1 = xp[:, H_DIM:]      # nc layer 0    : x @ w1

    # ---- ep_net = VGAE: GCN base (no act) -> fused GCN mean/logstd (relu),
    #      Z = eps * exp(logstd) + mean, adj_logits = Z @ Z.T ----
    def vgae(a, gnoise):
        hidden = mm(a, xwb)
        ms = mm(a, mm(hidden, wms))               # (N, 2Z) = [mean | logstd] pre-act
        mean = jnp.maximum(ms[:, :Z_DIM], 0.0)
        logstd = jnp.maximum(ms[:, Z_DIM:], 0.0)
        z = gnoise * jnp.exp(logstd) + mean       # reparameterization
        return zzT(z)

    # ---- sample_adjM ('add_sample', alpha == 1):
    #      p = logits / max(logits); straight-through forward value of
    #      RelaxedBernoulliStraightThrough(T, p).rsample() is
    #      round(sigmoid((logit(p) + logit(u)) / T)) == (p >= 1 - u) for T > 0.
    #      logits and u are symmetric, so instead of triu(1)+transpose we just
    #      zero the diagonal. ----
    def sample_add(logits, u):
        mx = jnp.max(jnp.max(logits, axis=1, keepdims=True), axis=0, keepdims=True)
        p = clamp_probs(logits * (1.0 / mx))      # exact scalar recip, N^2 muls
        hard = (p >= 1.0 - clamp_probs(u)).astype(f32)
        return hard * (1.0 - eye)

    # ---- normalize_adjM ('gcn'): fill diag 1, D^-1/2 A D^-1/2.
    #      a is symmetric -> compute row/col degree vectors by two reductions,
    #      no transpose. ----
    def normalize_gcn(a):
        a = a + eye                                          # sampled diag is exactly 0
        d_col = lax.rsqrt(jnp.sum(a, axis=1, keepdims=True))  # (N, 1)
        d_row = lax.rsqrt(jnp.sum(a, axis=0, keepdims=True))  # (1, N)
        return d_col * a * d_row

    logits1 = vgae(adj, g1)
    logits2 = vgae(logits1, g2)
    a2 = normalize_gcn(sample_add(logits2, u2))

    # ---- nc_net = GNN (n_layers=1 => 2 GCN layers): relu layer then linear ----
    # TODO(synk): dropout omitted (eval-mode / inference semantics)
    h = jnp.maximum(mm(a2, xw1) + b1, 0.0)
    nc_packed = mm(a2, mm(h, w2p)) + b2p   # (N, 128), nc at lanes [n, n+C), zeros elsewhere

    # Epilogue: one full-width store of the packed nc slab, one masked store of
    # logits2 into lanes [0, n).  Wrapper slices the slab back into the two outputs.
    out_ref[...] = nc_packed
    out_ref[:, :n] = logits2


def gaug_forward(adj, adj_orig, features, params, noise):
    del adj_orig  # unused on the alpha == 1 'add_sample' path of sample_adjM
    n = adj.shape[0]
    assert n + C_DIM <= PACK_W

    # --- parameter slab (wrapper-side concats/pads are free layout plumbing) ---
    def lane_pad(a, start):
        return jnp.pad(a, ((0, 0), (start, PACK_W - start - a.shape[1])))

    wbw1 = jnp.concatenate([params["w_base"], params["w1"]], axis=1)        # (F, 2H)
    wms = jnp.concatenate([params["w_mean"], params["w_logstd"]], axis=1)   # (H, 2Z)
    par_slab = jnp.concatenate([
        lane_pad(wbw1, 0),            # rows [0, F)
        lane_pad(wms, 0),             # rows [F, F+H)
        lane_pad(params["w2"], n),    # rows [F+H, F+2H), nc cols at lanes [n, n+C)
        lane_pad(params["b1"], 0),    # row  F+2H
        lane_pad(params["b2"], n),    # row  F+2H+1
    ], axis=0)                        # (F + 2H + 2, 128)

    # --- features + noise slab: [features | g1 | g2 | u2_sym] ---
    # Symmetrize the uniform noise (only its upper triangle is used by the
    # reference); this lets the kernel skip the triu+transpose symmetrization.
    t = jnp.triu(noise["u2"], 1)
    u_sym = t + t.T
    fn_slab = jnp.concatenate([features, noise["g1"], noise["g2"], u_sym], axis=1)

    vmem = pl.BlockSpec(memory_space=pltpu.MemorySpace.VMEM)
    packed = pl.pallas_call(
        _gaug_kernel,
        out_shape=jax.ShapeDtypeStruct((n, PACK_W), jnp.float32),
        in_specs=[vmem, vmem, vmem],
        out_specs=vmem,
    )(adj, fn_slab, par_slab)

    adj_logits2 = packed[:, :n]
    nc_logits = packed[:, n:n + C_DIM]
    return nc_logits, adj_logits2


if __name__ == "__main__":
    key = jax.random.PRNGKey(0)
    ks = jax.random.split(key, 12)

    # symmetric 0/1 adjacency (no self loops; normalize_adjM adds them)
    up = jnp.triu((jax.random.uniform(ks[0], (N, N)) < 0.1).astype(jnp.float32), 1)
    adj = up + up.T
    adj_orig = adj
    # small feature scale (see header note on the double-VGAE exp() chain)
    features = 0.1 * jax.random.normal(ks[1], (N, F_DIM), jnp.float32)

    def init_w(k, shape, scale=0.1):
        lim = scale * (6.0 / (shape[0] + shape[1])) ** 0.5
        return jax.random.uniform(k, shape, jnp.float32, -lim, lim)

    params = dict(
        w_base=init_w(ks[2], (F_DIM, H_DIM)),      # VGAE gcn_base   (no bias)
        w_mean=init_w(ks[3], (H_DIM, Z_DIM)),      # VGAE gcn_mean   (no bias)
        w_logstd=init_w(ks[4], (H_DIM, Z_DIM)),    # VGAE gcn_logstd (no bias)
        w1=init_w(ks[5], (F_DIM, H_DIM)),          # GNN layer 0
        b1=jnp.zeros((1, H_DIM), jnp.float32),
        w2=init_w(ks[6], (H_DIM, C_DIM)),          # GNN output layer
        b2=jnp.zeros((1, C_DIM), jnp.float32),
    )
    # stochastic nodes: gaussian reparam noise (VGAE) and uniform noise
    # (RelaxedBernoulli sampling) for the *live* second sample, host-side.
    noise = dict(
        g1=jax.random.normal(ks[7], (N, Z_DIM), jnp.float32),
        g2=jax.random.normal(ks[9], (N, Z_DIM), jnp.float32),
        u2=jax.random.uniform(ks[10], (N, N), jnp.float32),
    )

    nc_logits, adj_logits2 = jax.jit(gaug_forward)(adj, adj_orig, features,
                                                   params, noise)
    jax.block_until_ready((nc_logits, adj_logits2))
    assert nc_logits.shape == (N, C_DIM)
    assert adj_logits2.shape == (N, N)
    assert bool(jnp.all(jnp.isfinite(nc_logits)))
    assert bool(jnp.all(jnp.isfinite(adj_logits2)))
    # adj_logits2 = Z Z^T must be (numerically) symmetric
    sym_err = jnp.max(jnp.abs(adj_logits2 - adj_logits2.T))
    assert bool(sym_err <= 1e-3 * (1.0 + jnp.max(jnp.abs(adj_logits2))))
    print("KERNEL_OK")
</pallas_src>

<mosaic_0001>
module attributes {stable_mosaic.version = 11 : i64} {
  func.func @_gaug_kernel(%arg0: memref<64x64xf32, #tpu.memory_space<vmem>>, %arg1: memref<64x128xf32, #tpu.memory_space<vmem>>, %arg2: memref<98x128xf32, #tpu.memory_space<vmem>>, %arg3: memref<64x128xf32, #tpu.memory_space<vmem>>) attributes {dimension_semantics = [], scalar_prefetch = 0 : i64, scratch_operands = 0 : i64, tpu.core_type = #tpu.core_type<tc>} {
    %c0 = arith.constant 0 : index
    %c0_0 = arith.constant 0 : index
    %0 = vector.load %arg0[%c0, %c0_0] : memref<64x64xf32, #tpu.memory_space<vmem>>, vector<64x64xf32>
    %c0_1 = arith.constant 0 : index
    %c0_2 = arith.constant 0 : index
    %1 = vector.load %arg1[%c0_1, %c0_2] : memref<64x128xf32, #tpu.memory_space<vmem>>, vector<64x128xf32>
    %c0_3 = arith.constant 0 : index
    %c0_4 = arith.constant 0 : index
    %2 = vector.load %arg2[%c0_3, %c0_4] : memref<98x128xf32, #tpu.memory_space<vmem>>, vector<98x128xf32>
    %3 = vector.extract_strided_slice %1 {offsets = [0, 0], sizes = [64, 32], strides = [1, 1]} : vector<64x128xf32> to vector<64x32xf32>
    %4 = vector.extract_strided_slice %1 {offsets = [0, 32], sizes = [64, 16], strides = [1, 1]} : vector<64x128xf32> to vector<64x16xf32>
    %5 = vector.extract_strided_slice %1 {offsets = [0, 48], sizes = [64, 16], strides = [1, 1]} : vector<64x128xf32> to vector<64x16xf32>
    %6 = vector.extract_strided_slice %1 {offsets = [0, 64], sizes = [64, 64], strides = [1, 1]} : vector<64x128xf32> to vector<64x64xf32>
    %7 = vector.extract_strided_slice %2 {offsets = [0, 0], sizes = [32, 64], strides = [1, 1]} : vector<98x128xf32> to vector<32x64xf32>
    %8 = vector.extract_strided_slice %2 {offsets = [32, 0], sizes = [32, 32], strides = [1, 1]} : vector<98x128xf32> to vector<32x32xf32>
    %9 = vector.extract_strided_slice %2 {offsets = [64, 0], sizes = [32, 128], strides = [1, 1]} : vector<98x128xf32> to vector<32x128xf32>
    %10 = vector.extract_strided_slice %2 {offsets = [96, 0], sizes = [1, 32], strides = [1, 1]} : vector<98x128xf32> to vector<1x32xf32>
    %11 = vector.extract_strided_slice %2 {offsets = [97, 0], sizes = [1, 128], strides = [1, 1]} : vector<98x128xf32> to vector<1x128xf32>
    %12 = tpu.iota {dimensions = array<i32: 0>} : vector<64x64xi32>
    %13 = tpu.iota {dimensions = array<i32: 1>} : vector<64x64xi32>
    %14 = arith.cmpi eq, %13, %12 : vector<64x64xi32>
    %15 = arith.extui %14 : vector<64x64xi1> to vector<64x64xi32>
    %16 = arith.sitofp %15 : vector<64x64xi32> to vector<64x64xf32>
    %cst = arith.constant dense<0.000000e+00> : vector<64x64xf32>
    %17 = tpu.matmul %3, %7, %cst {dimension_numbers = #tpu.dot_dimension_numbers<[1], [0], [0], [1], [0, 0, 1, 1], [], []>} : vector<64x32xf32>, vector<32x64xf32>, vector<64x64xf32> -> vector<64x64xf32>
    %18 = vector.extract_strided_slice %17 {offsets = [0, 0], sizes = [64, 32], strides = [1, 1]} : vector<64x64xf32> to vector<64x32xf32>
    %19 = vector.extract_strided_slice %17 {offsets = [0, 32], sizes = [64, 32], strides = [1, 1]} : vector<64x64xf32> to vector<64x32xf32>
    %cst_5 = arith.constant dense<0.000000e+00> : vector<64x32xf32>
    %20 = tpu.matmul %0, %18, %cst_5 {dimension_numbers = #tpu.dot_dimension_numbers<[1], [0], [0], [1], [0, 0, 1, 1], [], []>} : vector<64x64xf32>, vector<64x32xf32>, vector<64x32xf32> -> vector<64x32xf32>
    %cst_6 = arith.constant dense<0.000000e+00> : vector<64x32xf32>
    %21 = tpu.matmul %20, %8, %cst_6 {dimension_numbers = #tpu.dot_dimension_numbers<[1], [0], [0], [1], [0, 0, 1, 1], [], []>} : vector<64x32xf32>, vector<32x32xf32>, vector<64x32xf32> -> vector<64x32xf32>
    %cst_7 = arith.constant dense<0.000000e+00> : vector<64x32xf32>
    %22 = tpu.matmul %0, %21, %cst_7 {dimension_numbers = #tpu.dot_dimension_numbers<[1], [0], [0], [1], [0, 0, 1, 1], [], []>} : vector<64x64xf32>, vector<64x32xf32>, vector<64x32xf32> -> vector<64x32xf32>
    %23 = vector.extract_strided_slice %22 {offsets = [0, 0], sizes = [64, 16], strides = [1, 1]} : vector<64x32xf32> to vector<64x16xf32>
    %cst_8 = arith.constant 0.000000e+00 : f32
    %24 = vector.broadcast %cst_8 : f32 to vector<64x16xf32>
    %25 = arith.maximumf %23, %24 : vector<64x16xf32>
    %26 = vector.extract_strided_slice %22 {offsets = [0, 16], sizes = [64, 16], strides = [1, 1]} : vector<64x32xf32> to vector<64x16xf32>
    %cst_9 = arith.constant 0.000000e+00 : f32
    %27 = vector.broadcast %cst_9 : f32 to vector<64x16xf32>
    %28 = arith.maximumf %26, %27 : vector<64x16xf32>
    %29 = math.exp %28 : vector<64x16xf32>
    %30 = arith.mulf %4, %29 : vector<64x16xf32>
    %31 = arith.addf %30, %25 : vector<64x16xf32>
    %cst_10 = arith.constant dense<0.000000e+00> : vector<64x64xf32>
    %32 = tpu.matmul %31, %31, %cst_10 {dimension_numbers = #tpu.dot_dimension_numbers<[1], [1], [0], [0], [0, 0, 1, 0], [], []>} : vector<64x16xf32>, vector<64x16xf32>, vector<64x64xf32> -> vector<64x64xf32>
    %cst_11 = arith.constant dense<0.000000e+00> : vector<64x32xf32>
    %33 = tpu.matmul %32, %18, %cst_11 {dimension_numbers = #tpu.dot_dimension_numbers<[1], [0], [0], [1], [0, 0, 1, 1], [], []>} : vector<64x64xf32>, vector<64x32xf32>, vector<64x32xf32> -> vector<64x32xf32>
    %cst_12 = arith.constant dense<0.000000e+00> : vector<64x32xf32>
    %34 = tpu.matmul %33, %8, %cst_12 {dimension_numbers = #tpu.dot_dimension_numbers<[1], [0], [0], [1], [0, 0, 1, 1], [], []>} : vector<64x32xf32>, vector<32x32xf32>, vector<64x32xf32> -> vector<64x32xf32>
    %cst_13 = arith.constant dense<0.000000e+00> : vector<64x32xf32>
    %35 = tpu.matmul %32, %34, %cst_13 {dimension_numbers = #tpu.dot_dimension_numbers<[1], [0], [0], [1], [0, 0, 1, 1], [], []>} : vector<64x64xf32>, vector<64x32xf32>, vector<64x32xf32> -> vector<64x32xf32>
    %36 = vector.extract_strided_slice %35 {offsets = [0, 0], sizes = [64, 16], strides = [1, 1]} : vector<64x32xf32> to vector<64x16xf32>
    %cst_14 = arith.constant 0.000000e+00 : f32
    %37 = vector.broadcast %cst_14 : f32 to vector<64x16xf32>
    %38 = arith.maximumf %36, %37 : vector<64x16xf32>
    %39 = vector.extract_strided_slice %35 {offsets = [0, 16], sizes = [64, 16], strides = [1, 1]} : vector<64x32xf32> to vector<64x16xf32>
    %cst_15 = arith.constant 0.000000e+00 : f32
    %40 = vector.broadcast %cst_15 : f32 to vector<64x16xf32>
    %41 = arith.maximumf %39, %40 : vector<64x16xf32>
    %42 = math.exp %41 : vector<64x16xf32>
    %43 = arith.mulf %5, %42 : vector<64x16xf32>
    %44 = arith.addf %43, %38 : vector<64x16xf32>
    %cst_16 = arith.constant dense<0.000000e+00> : vector<64x64xf32>
    %45 = tpu.matmul %44, %44, %cst_16 {dimension_numbers = #tpu.dot_dimension_numbers<[1], [1], [0], [0], [0, 0, 1, 0], [], []>} : vector<64x16xf32>, vector<64x16xf32>, vector<64x64xf32> -> vector<64x64xf32>
    %cst_17 = arith.constant dense<0xFF800000> : vector<64xf32>
    %46 = vector.multi_reduction <maximumf>, %45, %cst_17 [1] : vector<64x64xf32> to vector<64xf32>
    %47 = vector.shape_cast %46 : vector<64xf32> to vector<64x1xf32>
    %cst_18 = arith.constant dense<0xFF800000> : vector<1xf32>
    %48 = vector.multi_reduction <maximumf>, %47, %cst_18 [0] : vector<64x1xf32> to vector<1xf32>
    %49 = vector.shape_cast %48 : vector<1xf32> to vector<1x1xf32>
    %cst_19 = arith.constant 1.000000e+00 : f32
    %50 = vector.broadcast %cst_19 : f32 to vector<1x1xf32>
    %51 = arith.divf %50, %49 : vector<1x1xf32>
    %52 = vector.broadcast %51 : vector<1x1xf32> to vector<64x64xf32>
    %53 = arith.mulf %45, %52 : vector<64x64xf32>
    %cst_20 = arith.constant 1.1920929E-7 : f32
    %cst_21 = arith.constant 0.99999988 : f32
    %54 = vector.broadcast %cst_20 : f32 to vector<64x64xf32>
    %55 = arith.maximumf %54, %53 : vector<64x64xf32>
    %56 = vector.broadcast %cst_21 : f32 to vector<64x64xf32>
    %57 = arith.minimumf %56, %55 : vector<64x64xf32>
    %cst_22 = arith.constant 1.1920929E-7 : f32
    %cst_23 = arith.constant 0.99999988 : f32
    %58 = vector.broadcast %cst_22 : f32 to vector<64x64xf32>
    %59 = arith.maximumf %58, %6 : vector<64x64xf32>
    %60 = vector.broadcast %cst_23 : f32 to vector<64x64xf32>
    %61 = arith.minimumf %60, %59 : vector<64x64xf32>
    %cst_24 = arith.constant 1.000000e+00 : f32
    %62 = vector.broadcast %cst_24 : f32 to vector<64x64xf32>
    %63 = arith.subf %62, %61 : vector<64x64xf32>
    %64 = arith.cmpf oge, %57, %63 : vector<64x64xf32>
    %65 = arith.extui %64 : vector<64x64xi1> to vector<64x64xi32>
    %66 = arith.sitofp %65 : vector<64x64xi32> to vector<64x64xf32>
    %cst_25 = arith.constant 1.000000e+00 : f32
    %67 = vector.broadcast %cst_25 : f32 to vector<64x64xf32>
    %68 = arith.subf %67, %16 : vector<64x64xf32>
    %69 = arith.mulf %66, %68 : vector<64x64xf32>
    %70 = arith.addf %69, %16 : vector<64x64xf32>
    %cst_26 = arith.constant dense<0.000000e+00> : vector<64xf32>
    %71 = vector.multi_reduction <add>, %70, %cst_26 [1] : vector<64x64xf32> to vector<64xf32>
    %72 = vector.shape_cast %71 : vector<64xf32> to vector<64x1xf32>
    %73 = math.rsqrt %72 : vector<64x1xf32>
    %cst_27 = arith.constant dense<0.000000e+00> : vector<64xf32>
    %74 = vector.multi_reduction <add>, %70, %cst_27 [0] : vector<64x64xf32> to vector<64xf32>
    %75 = vector.shape_cast %74 : vector<64xf32> to vector<1x64xf32>
    %76 = math.rsqrt %75 : vector<1x64xf32>
    %77 = vector.broadcast %73 : vector<64x1xf32> to vector<64x64xf32>
    %78 = arith.mulf %77, %70 : vector<64x64xf32>
    %79 = vector.broadcast %76 : vector<1x64xf32> to vector<64x64xf32>
    %80 = arith.mulf %78, %79 : vector<64x64xf32>
    %cst_28 = arith.constant dense<0.000000e+00> : vector<64x32xf32>
    %81 = tpu.matmul %80, %19, %cst_28 {dimension_numbers = #tpu.dot_dimension_numbers<[1], [0], [0], [1], [0, 0, 1, 1], [], []>} : vector<64x64xf32>, vector<64x32xf32>, vector<64x32xf32> -> vector<64x32xf32>
    %82 = vector.broadcast %10 : vector<1x32xf32> to vector<64x32xf32>
    %83 = arith.addf %81, %82 : vector<64x32xf32>
    %cst_29 = arith.constant 0.000000e+00 : f32
    %84 = vector.broadcast %cst_29 : f32 to vector<64x32xf32>
    %85 = arith.maximumf %83, %84 : vector<64x32xf32>
    %cst_30 = arith.constant dense<0.000000e+00> : vector<64x128xf32>
    %86 = tpu.matmul %85, %9, %cst_30 {dimension_numbers = #tpu.dot_dimension_numbers<[1], [0], [0], [1], [0, 0, 1, 1], [], []>} : vector<64x32xf32>, vector<32x128xf32>, vector<64x128xf32> -> vector<64x128xf32>
    %cst_31 = arith.constant dense<0.000000e+00> : vector<64x128xf32>
    %87 = tpu.matmul %80, %86, %cst_31 {dimension_numbers = #tpu.dot_dimension_numbers<[1], [0], [0], [1], [0, 0, 1, 1], [], []>} : vector<64x64xf32>, vector<64x128xf32>, vector<64x128xf32> -> vector<64x128xf32>
    %88 = vector.broadcast %11 : vector<1x128xf32> to vector<64x128xf32>
    %89 = arith.addf %87, %88 : vector<64x128xf32>
    %c0_32 = arith.constant 0 : index
    %c0_33 = arith.constant 0 : index
    %90 = vector.load %arg3[%c0_32, %c0_33] : memref<64x128xf32, #tpu.memory_space<vmem>>, vector<64x128xf32>
    tpu.vector_store %arg3[%c0_32, %c0_33], %89 {strides = array<i32>} : memref<64x128xf32, #tpu.memory_space<vmem>>, vector<64x128xf32>,
    %c0_34 = arith.constant 0 : index
    %c0_35 = arith.constant 0 : index
    %91 = vector.load %arg3[%c0_34, %c0_35] : memref<64x128xf32, #tpu.memory_space<vmem>>, vector<64x64xf32>
    tpu.vector_store %arg3[%c0_34, %c0_35], %45 {strides = array<i32>} : memref<64x128xf32, #tpu.memory_space<vmem>>, vector<64x64xf32>,
    return
  }
}

</mosaic_0001>

<llo_original>
// kernel: gaug_forward.1
$region0: #{gaug_forward.1}
  #allocation0 [shape = 'u32[]', space=smem, size = 0x4, offset = 0x4, fixed_abs, tag = 'smem constant byte address 0x4 - core index']
  #allocation1 [shape = 'u32[72,128]{1,0:T(1,128)}', space=vmem, size = 0x9000, scoped, tag = 'internal scratch']
  %s0 = inlined_call_operand.vmem [shape: f32[64,64], index: 0, kind: input, shape index: {}]
  %s1 = inlined_call_operand.vmem [shape: f32[64,128], index: 1, kind: input, shape index: {}]
  %s2 = inlined_call_operand.vmem [shape: f32[98,128], index: 2, kind: input, shape index: {}]
  %s3 = inlined_call_operand.vmem [shape: f32[64,128], index: 3, kind: output, shape index: {}]
  %s4 = sld [smem:[#allocation0]]
  $region22: #{gaug_forward.1} parent=0
    _
  %s6 = ssub.s32 1, %s4
  %s7 = scalar_select 0, %s6, %s4
  // Predicated region
  $region2: #{gaug_forward.1} parent=0 // pred_check
    _
  $region3: #{gaug_forward.1} parent=0 // pred_check_branch
    %9 = sbr.rel (0) target = $region5
  $region4: #{gaug_forward.1} parent=0 // pred_region
    _
  $region5: #{gaug_forward.1} parent=0 // pred_fallthru
    _
  // Predicated region
  $region6: #{gaug_forward.1} parent=0 // pred_check
    _
  $region7: #{gaug_forward.1} parent=0 // pred_check_branch
    %11 = sbr.rel (0) target = $region9
  $region8: #{gaug_forward.1} parent=0 // pred_region
    _
  $region9: #{gaug_forward.1} parent=0 // pred_fallthru
    _
  // Predicated region
  $region10: #{gaug_forward.1} parent=0 // pred_check
    _
  $region11: #{gaug_forward.1} parent=0 // pred_check_branch
    %13 = sbr.rel (0) target = $region13
  $region12: #{gaug_forward.1} parent=0 // pred_region
    _
  $region13: #{gaug_forward.1} parent=0 // pred_fallthru
    _
  %v14 = vld [vmem:[%s0] sm:$0xff]
  %v15 = vld [vmem:[%s0 + $0x8] sm:$0xff]
  %v16 = vld [vmem:[%s0 + $0x10] sm:$0xff]
  %v17 = vld [vmem:[%s0 + $0x18] sm:$0xff]
  %v18 = vld [vmem:[%s0 + $0x20] sm:$0xff]
  %v19 = vld [vmem:[%s0 + $0x28] sm:$0xff]
  %v20 = vld [vmem:[%s0 + $0x30] sm:$0xff]
  %v21 = vld [vmem:[%s0 + $0x38] sm:$0xff]
  %v22 = vld [vmem:[%s1] sm:$0xff]
  %v23 = vld [vmem:[%s1 + $0x8] sm:$0xff]
  %v24 = vld [vmem:[%s1 + $0x10] sm:$0xff]
  %v25 = vld [vmem:[%s1 + $0x18] sm:$0xff]
  %v26 = vld [vmem:[%s1 + $0x20] sm:$0xff]
  %v27 = vld [vmem:[%s1 + $0x28] sm:$0xff]
  %v28 = vld [vmem:[%s1 + $0x30] sm:$0xff]
  %v29 = vld [vmem:[%s1 + $0x38] sm:$0xff]
  %v30 = vld [vmem:[%s2] sm:$0xff]
  %v31 = vld [vmem:[%s2 + $0x8] sm:$0xff]
  %v32 = vld [vmem:[%s2 + $0x10] sm:$0xff]
  %v33 = vld [vmem:[%s2 + $0x18] sm:$0xff]
  %v34 = vld [vmem:[%s2 + $0x20] sm:$0xff]
  %v35 = vld [vmem:[%s2 + $0x28] sm:$0xff]
  %v36 = vld [vmem:[%s2 + $0x30] sm:$0xff]
  %v37 = vld [vmem:[%s2 + $0x38] sm:$0xff]
  %v38 = vld [vmem:[%s2 + $0x40] sm:$0xff]
  %v39 = vld [vmem:[%s2 + $0x48] sm:$0xff]
  %v40 = vld [vmem:[%s2 + $0x50] sm:$0xff]
  %v41 = vld [vmem:[%s2 + $0x58] sm:$0xff]
  %v42 = vld [vmem:[%s2 + $0x60] sm:$0x3]
  %v43 = vlaneseq
  %v44 = vshrl.u32 %v43, 7
  %v45 = vadd.s32 %v44, 8
  %v46 = vadd.s32 %v44, 16
  %v47 = vadd.s32 %v44, 24
  %v48 = vadd.s32 %v44, 32
  %v49 = vadd.s32 %v44, 40
  %v50 = vadd.s32 %v44, 48
  %v51 = vadd.s32 %v44, 56
  %v52 = vlaneseq
  %v53 = vand.u32 %v52, 127
  %vm54 = vcmp.eq.s32.totalorder %v53, %v44
  %vm55 = vcmp.eq.s32.totalorder %v53, %v45
  %vm56 = vcmp.eq.s32.totalorder %v53, %v46
  %vm57 = vcmp.eq.s32.totalorder %v53, %v47
  %vm58 = vcmp.eq.s32.totalorder %v53, %v48
  %vm59 = vcmp.eq.s32.totalorder %v53, %v49
  %vm60 = vcmp.eq.s32.totalorder %v53, %v50
  %vm61 = vcmp.eq.s32.totalorder %v53, %v51
  %v62 = vsel %vm54, 1, 0
  %v63 = vsel %vm55, 1, 0
  %v64 = vsel %vm56, 1, 0
  %v65 = vsel %vm57, 1, 0
  %v66 = vsel %vm58, 1, 0
  %v67 = vsel %vm59, 1, 0
  %v68 = vsel %vm60, 1, 0
  %v69 = vsel %vm61, 1, 0
  %v70 = vcvt.s32.f32 %v62
  %v71 = vcvt.s32.f32 %v63
  %v72 = vcvt.s32.f32 %v64
  %v73 = vcvt.s32.f32 %v65
  %v74 = vcvt.s32.f32 %v66
  %v75 = vcvt.s32.f32 %v67
  %v76 = vcvt.s32.f32 %v68
  %v77 = vcvt.s32.f32 %v69
  %vm78 = vcmask 261120
  %v80 = vsel %vm78, %v22, 0
  %v83 = vsel %vm78, %v23, 0
  %v86 = vsel %vm78, %v24, 0
  %v89 = vsel %vm78, %v25, 0
  %v92 = vsel %vm78, %v26, 0
  %v95 = vsel %vm78, %v27, 0
  %v98 = vsel %vm78, %v28, 0
  %v101 = vsel %vm78, %v29, 0
  %103 = vmatpush.msra.mxu0 0.0
  %104 = vmatpush.msra.mxu0 0.0
  %105 = vmatpush.msra.mxu0 0.0
  %106 = vmatpush.msra.mxu0 0.0
  %107 = vmatpush.msra.mxu0 0.0
  %108 = vmatpush.msra.mxu0 0.0
  %109 = vmatpush.msra.mxu0 0.0
  %110 = vmatpush.msra.mxu0 0.0
  %111 = vmatpush.msra.mxu0 0.0
  %112 = vmatpush.msra.mxu0 0.0
  %113 = vmatpush.msra.mxu0 0.0
  %114 = vmatpush.msra.mxu0 0.0
  %115 = vmatpush.msra.mxu0 %v33
  %116 = vmatpush.msra.mxu0 %v32
  %117 = vmatpush.msra.mxu0 %v31
  %118 = vmatpush.msra.mxu0 %v30
  %119 = vmatmul.f32.gmra.mxu0 %v80
  %v120 = vpop.f32.mrf.mxu0
  %v121 = vadd.f32 0.0, %v120
  %122 = vmatmul.f32.gmra.mxu0 %v83
  %v123 = vpop.f32.mrf.mxu0
  %v124 = vadd.f32 0.0, %v123
  %125 = vmatmul.f32.gmra.mxu0 %v86
  %v126 = vpop.f32.mrf.mxu0
  %v127 = vadd.f32 0.0, %v126
  %128 = vmatmul.f32.gmra.mxu0 %v89
  %v129 = vpop.f32.mrf.mxu0
  %v130 = vadd.f32 0.0, %v129
  %131 = vmatmul.f32.gmra.mxu0 %v92
  %v132 = vpop.f32.mrf.mxu0
  %v133 = vadd.f32 0.0, %v132
  %134 = vmatmul.f32.gmra.mxu0 %v95
  %v135 = vpop.f32.mrf.mxu0
  %v136 = vadd.f32 0.0, %v135
  %137 = vmatmul.f32.gmra.mxu0 %v98
  %v138 = vpop.f32.mrf.mxu0
  %v139 = vadd.f32 0.0, %v138
  %140 = vmatmul.f32.gmra.mxu0 %v101
  %v141 = vpop.f32.mrf.mxu0
  %v142 = vadd.f32 0.0, %v141
  %143 = vdwg.mxu0
  %vm144 = vcmask 523264
  %v146 = vsel %vm144, %v14, 0
  %v149 = vsel %vm144, %v15, 0
  %v152 = vsel %vm144, %v16, 0
  %v155 = vsel %vm144, %v17, 0
  %v158 = vsel %vm144, %v18, 0
  %v161 = vsel %vm144, %v19, 0
  %v164 = vsel %vm144, %v20, 0
  %v167 = vsel %vm144, %v21, 0
  %169 = vmatpush.msra.mxu0 0.0
  %170 = vmatpush.msra.mxu0 0.0
  %171 = vmatpush.msra.mxu0 0.0
  %172 = vmatpush.msra.mxu0 0.0
  %173 = vmatpush.msra.mxu0 0.0
  %174 = vmatpush.msra.mxu0 0.0
  %175 = vmatpush.msra.mxu0 0.0
  %176 = vmatpush.msra.mxu0 0.0
  %177 = vmatpush.msra.mxu0 %v142
  %178 = vmatpush.msra.mxu0 %v139
  %179 = vmatpush.msra.mxu0 %v136
  %180 = vmatpush.msra.mxu0 %v133
  %181 = vmatpush.msra.mxu0 %v130
  %182 = vmatpush.msra.mxu0 %v127
  %183 = vmatpush.msra.mxu0 %v124
  %184 = vmatpush.msra.mxu0 %v121
  %185 = vmatmul.f32.gmra.mxu0 %v146
  %v186 = vpop.f32.mrf.mxu0
  %v187 = vadd.f32 0.0, %v186
  %188 = vmatmul.f32.gmra.mxu0 %v149
  %v189 = vpop.f32.mrf.mxu0
  %v190 = vadd.f32 0.0, %v189
  %191 = vmatmul.f32.gmra.mxu0 %v152
  %v192 = vpop.f32.mrf.mxu0
  %v193 = vadd.f32 0.0, %v192
  %194 = vmatmul.f32.gmra.mxu0 %v155
  %v195 = vpop.f32.mrf.mxu0
  %v196 = vadd.f32 0.0, %v195
  %197 = vmatmul.f32.gmra.mxu0 %v158
  %v198 = vpop.f32.mrf.mxu0
  %v199 = vadd.f32 0.0, %v198
  %200 = vmatmul.f32.gmra.mxu0 %v161
  %v201 = vpop.f32.mrf.mxu0
  %v202 = vadd.f32 0.0, %v201
  %203 = vmatmul.f32.gmra.mxu0 %v164
  %v204 = vpop.f32.mrf.mxu0
  %v205 = vadd.f32 0.0, %v204
  %206 = vmatmul.f32.gmra.mxu0 %v167
  %v207 = vpop.f32.mrf.mxu0
  %v208 = vadd.f32 0.0, %v207
  %209 = vdwg.mxu0
  %v211 = vsel %vm78, %v187, 0
  %v214 = vsel %vm78, %v190, 0
  %v217 = vsel %vm78, %v193, 0
  %v220 = vsel %vm78, %v196, 0
  %v223 = vsel %vm78, %v199, 0
  %v226 = vsel %vm78, %v202, 0
  %v229 = vsel %vm78, %v205, 0
  %v232 = vsel %vm78, %v208, 0
  %234 = vmatpush.msra.mxu0 0.0
  %235 = vmatpush.msra.mxu0 0.0
  %236 = vmatpush.msra.mxu0 0.0
  %237 = vmatpush.msra.mxu0 0.0
  %238 = vmatpush.msra.mxu0 0.0
  %239 = vmatpush.msra.mxu0 0.0
  %240 = vmatpush.msra.mxu0 0.0
  %241 = vmatpush.msra.mxu0 0.0
  %242 = vmatpush.msra.mxu0 0.0
  %243 = vmatpush.msra.mxu0 0.0
  %244 = vmatpush.msra.mxu0 0.0
  %245 = vmatpush.msra.mxu0 0.0
  %246 = vmatpush.msra.mxu0 %v37
  %247 = vmatpush.msra.mxu0 %v36
  %248 = vmatpush.msra.mxu0 %v35
  %249 = vmatpush.msra.mxu0 %v34
  %250 = vmatmul.f32.gmra.mxu0 %v211
  %v251 = vpop.f32.mrf.mxu0
  %v252 = vadd.f32 0.0, %v251
  %253 = vmatmul.f32.gmra.mxu0 %v214
  %v254 = vpop.f32.mrf.mxu0
  %v255 = vadd.f32 0.0, %v254
  %256 = vmatmul.f32.gmra.mxu0 %v217
  %v257 = vpop.f32.mrf.mxu0
  %v258 = vadd.f32 0.0, %v257
  %259 = vmatmul.f32.gmra.mxu0 %v220
  %v260 = vpop.f32.mrf.mxu0
  %v261 = vadd.f32 0.0, %v260
  %262 = vmatmul.f32.gmra.mxu0 %v223
  %v263 = vpop.f32.mrf.mxu0
  %v264 = vadd.f32 0.0, %v263
  %265 = vmatmul.f32.gmra.mxu0 %v226
  %v266 = vpop.f32.mrf.mxu0
  %v267 = vadd.f32 0.0, %v266
  %268 = vmatmul.f32.gmra.mxu0 %v229
  %v269 = vpop.f32.mrf.mxu0
  %v270 = vadd.f32 0.0, %v269
  %271 = vmatmul.f32.gmra.mxu0 %v232
  %v272 = vpop.f32.mrf.mxu0
  %v273 = vadd.f32 0.0, %v272
  %274 = vdwg.mxu0
  %275 = vmatpush.msra.mxu0 0.0
  %276 = vmatpush.msra.mxu0 0.0
  %277 = vmatpush.msra.mxu0 0.0
  %278 = vmatpush.msra.mxu0 0.0
  %279 = vmatpush.msra.mxu0 0.0
  %280 = vmatpush.msra.mxu0 0.0
  %281 = vmatpush.msra.mxu0 0.0
  %282 = vmatpush.msra.mxu0 0.0
  %283 = vmatpush.msra.mxu0 %v273
  %284 = vmatpush.msra.mxu0 %v270
  %285 = vmatpush.msra.mxu0 %v267
  %286 = vmatpush.msra.mxu0 %v264
  %287 = vmatpush.msra.mxu0 %v261
  %288 = vmatpush.msra.mxu0 %v258
  %289 = vmatpush.msra.mxu0 %v255
  %290 = vmatpush.msra.mxu0 %v252
  %291 = vmatmul.f32.gmra.mxu0 %v146
  %v292 = vpop.f32.mrf.mxu0
  %v293 = vadd.f32 0.0, %v292
  %294 = vmatmul.f32.gmra.mxu0 %v149
  %v295 = vpop.f32.mrf.mxu0
  %v296 = vadd.f32 0.0, %v295
  %297 = vmatmul.f32.gmra.mxu0 %v152
  %v298 = vpop.f32.mrf.mxu0
  %v299 = vadd.f32 0.0, %v298
  %300 = vmatmul.f32.gmra.mxu0 %v155
  %v301 = vpop.f32.mrf.mxu0
  %v302 = vadd.f32 0.0, %v301
  %303 = vmatmul.f32.gmra.mxu0 %v158
  %v304 = vpop.f32.mrf.mxu0
  %v305 = vadd.f32 0.0, %v304
  %306 = vmatmul.f32.gmra.mxu0 %v161
  %v307 = vpop.f32.mrf.mxu0
  %v308 = vadd.f32 0.0, %v307
  %309 = vmatmul.f32.gmra.mxu0 %v164
  %v310 = vpop.f32.mrf.mxu0
  %v311 = vadd.f32 0.0, %v310
  %312 = vmatmul.f32.gmra.mxu0 %v167
  %v313 = vpop.f32.mrf.mxu0
  %v314 = vadd.f32 0.0, %v313
  %315 = vdwg.mxu0
  %v316 = vmax.f32 %v293, 0.0
  %v317 = vmax.f32 %v296, 0.0
  %v318 = vmax.f32 %v299, 0.0
  %v319 = vmax.f32 %v302, 0.0
  %v320 = vmax.f32 %v305, 0.0
  %v321 = vmax.f32 %v308, 0.0
  %v322 = vmax.f32 %v311, 0.0
  %v323 = vmax.f32 %v314, 0.0
  %v324 = vmul.f32 %v316, 1.442695
  %v325 = vpow.pop %v324
  %v326 = vmul.f32 %v317, 1.442695
  %v327 = vpow.pop %v326
  %v328 = vmul.f32 %v318, 1.442695
  %v329 = vpow.pop %v328
  %v330 = vmul.f32 %v319, 1.442695
  %v331 = vpow.pop %v330
  %v332 = vmul.f32 %v320, 1.442695
  %v333 = vpow.pop %v332
  %v334 = vmul.f32 %v321, 1.442695
  %v335 = vpow.pop %v334
  %v336 = vmul.f32 %v322, 1.442695
  %v337 = vpow.pop %v336
  %v338 = vmul.f32 %v323, 1.442695
  %v339 = vpow.pop %v338
  %348 = vrot.lane.b32.xlu0 %v325, 16
  %v349 = vpop.permute.xlu0 %348
  %350 = vrot.lane.b32.xlu0 %v327, 16
  %v351 = vpop.permute.xlu0 %350
  %352 = vrot.lane.b32.xlu0 %v329, 16
  %v353 = vpop.permute.xlu0 %352
  %354 = vrot.lane.b32.xlu0 %v331, 16
  %v355 = vpop.permute.xlu0 %354
  %356 = vrot.lane.b32.xlu0 %v333, 16
  %v357 = vpop.permute.xlu0 %356
  %358 = vrot.lane.b32.xlu0 %v335, 16
  %v359 = vpop.permute.xlu0 %358
  %360 = vrot.lane.b32.xlu0 %v337, 16
  %v361 = vpop.permute.xlu0 %360
  %362 = vrot.lane.b32.xlu0 %v339, 16
  %v363 = vpop.permute.xlu0 %362
  %v372 = vmul.f32 %v22, %v349
  %v373 = vmul.f32 %v23, %v351
  %v374 = vmul.f32 %v24, %v353
  %v375 = vmul.f32 %v25, %v355
  %v376 = vmul.f32 %v26, %v357
  %v377 = vmul.f32 %v27, %v359
  %v378 = vmul.f32 %v28, %v361
  %v379 = vmul.f32 %v29, %v363
  %388 = vrot.lane.b32.xlu0 %v316, 32
  %v389 = vpop.permute.xlu0 %388
  %390 = vrot.lane.b32.xlu0 %v317, 32
  %v391 = vpop.permute.xlu0 %390
  %392 = vrot.lane.b32.xlu0 %v318, 32
  %v393 = vpop.permute.xlu0 %392
  %394 = vrot.lane.b32.xlu0 %v319, 32
  %v395 = vpop.permute.xlu0 %394
  %396 = vrot.lane.b32.xlu0 %v320, 32
  %v397 = vpop.permute.xlu0 %396
  %398 = vrot.lane.b32.xlu0 %v321, 32
  %v399 = vpop.permute.xlu0 %398
  %400 = vrot.lane.b32.xlu0 %v322, 32
  %v401 = vpop.permute.xlu0 %400
  %402 = vrot.lane.b32.xlu0 %v323, 32
  %v403 = vpop.permute.xlu0 %402
  %v412 = vadd.f32 %v372, %v389
  %v413 = vadd.f32 %v373, %v391
  %v414 = vadd.f32 %v374, %v393
  %v415 = vadd.f32 %v375, %v395
  %v416 = vadd.f32 %v376, %v397
  %v417 = vadd.f32 %v377, %v399
  %v418 = vadd.f32 %v378, %v401
  %v419 = vadd.f32 %v379, %v403
  %428 = vrot.lane.b32.xlu0 %v412, 96
  %v429 = vpop.permute.xlu0 %428
  %430 = vrot.lane.b32.xlu0 %v413, 96
  %v431 = vpop.permute.xlu0 %430
  %432 = vrot.lane.b32.xlu0 %v414, 96
  %v433 = vpop.permute.xlu0 %432
  %434 = vrot.lane.b32.xlu0 %v415, 96
  %v435 = vpop.permute.xlu0 %434
  %436 = vrot.lane.b32.xlu0 %v416, 96
  %v437 = vpop.permute.xlu0 %436
  %438 = vrot.lane.b32.xlu0 %v417, 96
  %v439 = vpop.permute.xlu0 %438
  %440 = vrot.lane.b32.xlu0 %v418, 96
  %v441 = vpop.permute.xlu0 %440
  %442 = vrot.lane.b32.xlu0 %v419, 96
  %v443 = vpop.permute.xlu0 %442
  %vm444 = vcmask 130048
  %v445 = vsel %vm444, %v429, 0
  %v447 = vsel %vm444, %v431, 0
  %v449 = vsel %vm444, %v433, 0
  %v451 = vsel %vm444, %v435, 0
  %v453 = vsel %vm444, %v437, 0
  %v455 = vsel %vm444, %v439, 0
  %v457 = vsel %vm444, %v441, 0
  %v459 = vsel %vm444, %v443, 0
  %461 = vmatpush.xpose.msra.mxu0 0.0
  %462 = vmatpush.xpose.msra.mxu0 0.0
  %463 = vmatpush.xpose.msra.mxu0 0.0
  %464 = vmatpush.xpose.msra.mxu0 0.0
  %465 = vmatpush.xpose.msra.mxu0 0.0
  %466 = vmatpush.xpose.msra.mxu0 0.0
  %467 = vmatpush.xpose.msra.mxu0 0.0
  %468 = vmatpush.xpose.msra.mxu0 0.0
  %469 = vmatpush.xpose.msra.mxu0 %v459
  %470 = vmatpush.xpose.msra.mxu0 %v457
  %471 = vmatpush.xpose.msra.mxu0 %v455
  %472 = vmatpush.xpose.msra.mxu0 %v453
  %473 = vmatpush.xpose.msra.mxu0 %v451
  %474 = vmatpush.xpose.msra.mxu0 %v449
  %475 = vmatpush.xpose.msra.mxu0 %v447
  %476 = vmatpush.xpose.msra.mxu0 %v445
  %477 = vmatmul.f32.gmra.mxu0 %v445
  %v478 = vpop.f32.mrf.mxu0
  %v479 = vadd.f32 0.0, %v478
  %480 = vmatmul.f32.gmra.mxu0 %v447
  %v481 = vpop.f32.mrf.mxu0
  %v482 = vadd.f32 0.0, %v481
  %483 = vmatmul.f32.gmra.mxu0 %v449
  %v484 = vpop.f32.mrf.mxu0
  %v485 = vadd.f32 0.0, %v484
  %486 = vmatmul.f32.gmra.mxu0 %v451
  %v487 = vpop.f32.mrf.mxu0
  %v488 = vadd.f32 0.0, %v487
  %489 = vmatmul.f32.gmra.mxu0 %v453
  %v490 = vpop.f32.mrf.mxu0
  %v491 = vadd.f32 0.0, %v490
  %492 = vmatmul.f32.gmra.mxu0 %v455
  %v493 = vpop.f32.mrf.mxu0
  %v494 = vadd.f32 0.0, %v493
  %495 = vmatmul.f32.gmra.mxu0 %v457
  %v496 = vpop.f32.mrf.mxu0
  %v497 = vadd.f32 0.0, %v496
  %498 = vmatmul.f32.gmra.mxu0 %v459
  %v499 = vpop.f32.mrf.mxu0
  %v500 = vadd.f32 0.0, %v499
  %501 = vdwg.mxu0
  %v503 = vsel %vm144, %v479, 0
  %v506 = vsel %vm144, %v482, 0
  %v509 = vsel %vm144, %v485, 0
  %v512 = vsel %vm144, %v488, 0
  %v515 = vsel %vm144, %v491, 0
  %v518 = vsel %vm144, %v494, 0
  %v521 = vsel %vm144, %v497, 0
  %v524 = vsel %vm144, %v500, 0
  %526 = vmatpush.msra.mxu0 0.0
  %527 = vmatpush.msra.mxu0 0.0
  %528 = vmatpush.msra.mxu0 0.0
  %529 = vmatpush.msra.mxu0 0.0
  %530 = vmatpush.msra.mxu0 0.0
  %531 = vmatpush.msra.mxu0 0.0
  %532 = vmatpush.msra.mxu0 0.0
  %533 = vmatpush.msra.mxu0 0.0
  %534 = vmatpush.msra.mxu0 %v142
  %535 = vmatpush.msra.mxu0 %v139
  %536 = vmatpush.msra.mxu0 %v136
  %537 = vmatpush.msra.mxu0 %v133
  %538 = vmatpush.msra.mxu0 %v130
  %539 = vmatpush.msra.mxu0 %v127
  %540 = vmatpush.msra.mxu0 %v124
  %541 = vmatpush.msra.mxu0 %v121
  %542 = vmatmul.f32.gmra.mxu0 %v503
  %v543 = vpop.f32.mrf.mxu0
  %v544 = vadd.f32 0.0, %v543
  %545 = vmatmul.f32.gmra.mxu0 %v506
  %v546 = vpop.f32.mrf.mxu0
  %v547 = vadd.f32 0.0, %v546
  %548 = vmatmul.f32.gmra.mxu0 %v509
  %v549 = vpop.f32.mrf.mxu0
  %v550 = vadd.f32 0.0, %v549
  %551 = vmatmul.f32.gmra.mxu0 %v512
  %v552 = vpop.f32.mrf.mxu0
  %v553 = vadd.f32 0.0, %v552
  %554 = vmatmul.f32.gmra.mxu0 %v515
  %v555 = vpop.f32.mrf.mxu0
  %v556 = vadd.f32 0.0, %v555
  %557 = vmatmul.f32.gmra.mxu0 %v518
  %v558 = vpop.f32.mrf.mxu0
  %v559 = vadd.f32 0.0, %v558
  %560 = vmatmul.f32.gmra.mxu0 %v521
  %v561 = vpop.f32.mrf.mxu0
  %v562 = vadd.f32 0.0, %v561
  %563 = vmatmul.f32.gmra.mxu0 %v524
  %v564 = vpop.f32.mrf.mxu0
  %v565 = vadd.f32 0.0, %v564
  %566 = vdwg.mxu0
  %v568 = vsel %vm78, %v544, 0
  %v571 = vsel %vm78, %v547, 0
  %v574 = vsel %vm78, %v550, 0
  %v577 = vsel %vm78, %v553, 0
  %v580 = vsel %vm78, %v556, 0
  %v583 = vsel %vm78, %v559, 0
  %v586 = vsel %vm78, %v562, 0
  %v589 = vsel %vm78, %v565, 0
  %591 = vmatpush.msra.mxu0 0.0
  %592 = vmatpush.msra.mxu0 0.0
  %593 = vmatpush.msra.mxu0 0.0
  %594 = vmatpush.msra.mxu0 0.0
  %595 = vmatpush.msra.mxu0 0.0
  %596 = vmatpush.msra.mxu0 0.0
  %597 = vmatpush.msra.mxu0 0.0
  %598 = vmatpush.msra.mxu0 0.0
  %599 = vmatpush.msra.mxu0 0.0
  %600 = vmatpush.msra.mxu0 0.0
  %601 = vmatpush.msra.mxu0 0.0
  %602 = vmatpush.msra.mxu0 0.0
  %603 = vmatpush.msra.mxu0 %v37
  %604 = vmatpush.msra.mxu0 %v36
  %605 = vmatpush.msra.mxu0 %v35
  %606 = vmatpush.msra.mxu0 %v34
  %607 = vmatmul.f32.gmra.mxu0 %v568
  %v608 = vpop.f32.mrf.mxu0
  %v609 = vadd.f32 0.0, %v608
  %610 = vmatmul.f32.gmra.mxu0 %v571
  %v611 = vpop.f32.mrf.mxu0
  %v612 = vadd.f32 0.0, %v611
  %613 = vmatmul.f32.gmra.mxu0 %v574
  %v614 = vpop.f32.mrf.mxu0
  %v615 = vadd.f32 0.0, %v614
  %616 = vmatmul.f32.gmra.mxu0 %v577
  %v617 = vpop.f32.mrf.mxu0
  %v618 = vadd.f32 0.0, %v617
  %619 = vmatmul.f32.gmra.mxu0 %v580
  %v620 = vpop.f32.mrf.mxu0
  %v621 = vadd.f32 0.0, %v620
  %622 = vmatmul.f32.gmra.mxu0 %v583
  %v623 = vpop.f32.mrf.mxu0
  %v624 = vadd.f32 0.0, %v623
  %625 = vmatmul.f32.gmra.mxu0 %v586
  %v626 = vpop.f32.mrf.mxu0
  %v627 = vadd.f32 0.0, %v626
  %628 = vmatmul.f32.gmra.mxu0 %v589
  %v629 = vpop.f32.mrf.mxu0
  %v630 = vadd.f32 0.0, %v629
  %631 = vdwg.mxu0
  %632 = vmatpush.msra.mxu0 0.0
  %633 = vmatpush.msra.mxu0 0.0
  %634 = vmatpush.msra.mxu0 0.0
  %635 = vmatpush.msra.mxu0 0.0
  %636 = vmatpush.msra.mxu0 0.0
  %637 = vmatpush.msra.mxu0 0.0
  %638 = vmatpush.msra.mxu0 0.0
  %639 = vmatpush.msra.mxu0 0.0
  %640 = vmatpush.msra.mxu0 %v630
  %641 = vmatpush.msra.mxu0 %v627
  %642 = vmatpush.msra.mxu0 %v624
  %643 = vmatpush.msra.mxu0 %v621
  %644 = vmatpush.msra.mxu0 %v618
  %645 = vmatpush.msra.mxu0 %v615
  %646 = vmatpush.msra.mxu0 %v612
  %647 = vmatpush.msra.mxu0 %v609
  %648 = vmatmul.f32.gmra.mxu0 %v503
  %v649 = vpop.f32.mrf.mxu0
  %v650 = vadd.f32 0.0, %v649
  %651 = vmatmul.f32.gmra.mxu0 %v506
  %v652 = vpop.f32.mrf.mxu0
  %v653 = vadd.f32 0.0, %v652
  %654 = vmatmul.f32.gmra.mxu0 %v509
  %v655 = vpop.f32.mrf.mxu0
  %v656 = vadd.f32 0.0, %v655
  %657 = vmatmul.f32.gmra.mxu0 %v512
  %v658 = vpop.f32.mrf.mxu0
  %v659 = vadd.f32 0.0, %v658
  %660 = vmatmul.f32.gmra.mxu0 %v515
  %v661 = vpop.f32.mrf.mxu0
  %v662 = vadd.f32 0.0, %v661
  %663 = vmatmul.f32.gmra.mxu0 %v518
  %v664 = vpop.f32.mrf.mxu0
  %v665 = vadd.f32 0.0, %v664
  %666 = vmatmul.f32.gmra.mxu0 %v521
  %v667 = vpop.f32.mrf.mxu0
  %v668 = vadd.f32 0.0, %v667
  %669 = vmatmul.f32.gmra.mxu0 %v524
  %v670 = vpop.f32.mrf.mxu0
  %v671 = vadd.f32 0.0, %v670
  %672 = vdwg.mxu0
  %v673 = vmax.f32 %v650, 0.0
  %v674 = vmax.f32 %v653, 0.0
  %v675 = vmax.f32 %v656, 0.0
  %v676 = vmax.f32 %v659, 0.0
  %v677 = vmax.f32 %v662, 0.0
  %v678 = vmax.f32 %v665, 0.0
  %v679 = vmax.f32 %v668, 0.0
  %v680 = vmax.f32 %v671, 0.0
  %v681 = vmul.f32 %v673, 1.442695
  %v682 = vpow.pop %v681
  %v683 = vmul.f32 %v674, 1.442695
  %v684 = vpow.pop %v683
  %v685 = vmul.f32 %v675, 1.442695
  %v686 = vpow.pop %v685
  %v687 = vmul.f32 %v676, 1.442695
  %v688 = vpow.pop %v687
  %v689 = vmul.f32 %v677, 1.442695
  %v690 = vpow.pop %v689
  %v691 = vmul.f32 %v678, 1.442695
  %v692 = vpow.pop %v691
  %v693 = vmul.f32 %v679, 1.442695
  %v694 = vpow.pop %v693
  %v695 = vmul.f32 %v680, 1.442695
  %v696 = vpow.pop %v695
  %705 = vrot.lane.b32.xlu0 %v682, 32
  %v706 = vpop.permute.xlu0 %705
  %707 = vrot.lane.b32.xlu0 %v684, 32
  %v708 = vpop.permute.xlu0 %707
  %709 = vrot.lane.b32.xlu0 %v686, 32
  %v710 = vpop.permute.xlu0 %709
  %711 = vrot.lane.b32.xlu0 %v688, 32
  %v712 = vpop.permute.xlu0 %711
  %713 = vrot.lane.b32.xlu0 %v690, 32
  %v714 = vpop.permute.xlu0 %713
  %715 = vrot.lane.b32.xlu0 %v692, 32
  %v716 = vpop.permute.xlu0 %715
  %717 = vrot.lane.b32.xlu0 %v694, 32
  %v718 = vpop.permute.xlu0 %717
  %719 = vrot.lane.b32.xlu0 %v696, 32
  %v720 = vpop.permute.xlu0 %719
  %v729 = vmul.f32 %v22, %v706
  %v730 = vmul.f32 %v23, %v708
  %v731 = vmul.f32 %v24, %v710
  %v732 = vmul.f32 %v25, %v712
  %v733 = vmul.f32 %v26, %v714
  %v734 = vmul.f32 %v27, %v716
  %v735 = vmul.f32 %v28, %v718
  %v736 = vmul.f32 %v29, %v720
  %745 = vrot.lane.b32.xlu0 %v673, 48
  %v746 = vpop.permute.xlu0 %745
  %747 = vrot.lane.b32.xlu0 %v674, 48
  %v748 = vpop.permute.xlu0 %747
  %749 = vrot.lane.b32.xlu0 %v675, 48
  %v750 = vpop.permute.xlu0 %749
  %751 = vrot.lane.b32.xlu0 %v676, 48
  %v752 = vpop.permute.xlu0 %751
  %753 = vrot.lane.b32.xlu0 %v677, 48
  %v754 = vpop.permute.xlu0 %753
  %755 = vrot.lane.b32.xlu0 %v678, 48
  %v756 = vpop.permute.xlu0 %755
  %757 = vrot.lane.b32.xlu0 %v679, 48
  %v758 = vpop.permute.xlu0 %757
  %759 = vrot.lane.b32.xlu0 %v680, 48
  %v760 = vpop.permute.xlu0 %759
  %v769 = vadd.f32 %v729, %v746
  %v770 = vadd.f32 %v730, %v748
  %v771 = vadd.f32 %v731, %v750
  %v772 = vadd.f32 %v732, %v752
  %v773 = vadd.f32 %v733, %v754
  %v774 = vadd.f32 %v734, %v756
  %v775 = vadd.f32 %v735, %v758
  %v776 = vadd.f32 %v736, %v760
  %785 = vrot.lane.b32.xlu0 %v769, 80
  %v786 = vpop.permute.xlu0 %785
  %787 = vrot.lane.b32.xlu0 %v770, 80
  %v788 = vpop.permute.xlu0 %787
  %789 = vrot.lane.b32.xlu0 %v771, 80
  %v790 = vpop.permute.xlu0 %789
  %791 = vrot.lane.b32.xlu0 %v772, 80
  %v792 = vpop.permute.xlu0 %791
  %793 = vrot.lane.b32.xlu0 %v773, 80
  %v794 = vpop.permute.xlu0 %793
  %795 = vrot.lane.b32.xlu0 %v774, 80
  %v796 = vpop.permute.xlu0 %795
  %797 = vrot.lane.b32.xlu0 %v775, 80
  %v798 = vpop.permute.xlu0 %797
  %799 = vrot.lane.b32.xlu0 %v776, 80
  %v800 = vpop.permute.xlu0 %799
  %v801 = vsel %vm444, %v786, 0
  %v803 = vsel %vm444, %v788, 0
  %v805 = vsel %vm444, %v790, 0
  %v807 = vsel %vm444, %v792, 0
  %v809 = vsel %vm444, %v794, 0
  %v811 = vsel %vm444, %v796, 0
  %v813 = vsel %vm444, %v798, 0
  %v815 = vsel %vm444, %v800, 0
  %817 = vmatpush.xpose.msra.mxu0 0.0
  %818 = vmatpush.xpose.msra.mxu0 0.0
  %819 = vmatpush.xpose.msra.mxu0 0.0
  %820 = vmatpush.xpose.msra.mxu0 0.0
  %821 = vmatpush.xpose.msra.mxu0 0.0
  %822 = vmatpush.xpose.msra.mxu0 0.0
  %823 = vmatpush.xpose.msra.mxu0 0.0
  %824 = vmatpush.xpose.msra.mxu0 0.0
  %825 = vmatpush.xpose.msra.mxu0 %v815
  %826 = vmatpush.xpose.msra.mxu0 %v813
  %827 = vmatpush.xpose.msra.mxu0 %v811
  %828 = vmatpush.xpose.msra.mxu0 %v809
  %829 = vmatpush.xpose.msra.mxu0 %v807
  %830 = vmatpush.xpose.msra.mxu0 %v805
  %831 = vmatpush.xpose.msra.mxu0 %v803
  %832 = vmatpush.xpose.msra.mxu0 %v801
  %833 = vmatmul.f32.gmra.mxu0 %v801
  %v834 = vpop.f32.mrf.mxu0
  %v835 = vadd.f32 0.0, %v834
  %836 = vmatmul.f32.gmra.mxu0 %v803
  %v837 = vpop.f32.mrf.mxu0
  %v838 = vadd.f32 0.0, %v837
  %839 = vmatmul.f32.gmra.mxu0 %v805
  %v840 = vpop.f32.mrf.mxu0
  %v841 = vadd.f32 0.0, %v840
  %842 = vmatmul.f32.gmra.mxu0 %v807
  %v843 = vpop.f32.mrf.mxu0
  %v844 = vadd.f32 0.0, %v843
  %845 = vmatmul.f32.gmra.mxu0 %v809
  %v846 = vpop.f32.mrf.mxu0
  %v847 = vadd.f32 0.0, %v846
  %848 = vmatmul.f32.gmra.mxu0 %v811
  %v849 = vpop.f32.mrf.mxu0
  %v850 = vadd.f32 0.0, %v849
  %851 = vmatmul.f32.gmra.mxu0 %v813
  %v852 = vpop.f32.mrf.mxu0
  %v853 = vadd.f32 0.0, %v852
  %854 = vmatmul.f32.gmra.mxu0 %v815
  %v855 = vpop.f32.mrf.mxu0
  %v856 = vadd.f32 0.0, %v855
  %857 = vdwg.mxu0
  %v858 = vsel %vm144, %v835, -inf
  %859 = vmax.xlane.f32.xlu0 %v858
  %v860 = vpop.xlane.xlu0 %859
  %v861 = vsel %vm144, %v838, -inf
  %862 = vmax.xlane.f32.xlu0 %v861
  %v863 = vpop.xlane.xlu0 %862
  %v864 = vsel %vm144, %v841, -inf
  %865 = vmax.xlane.f32.xlu0 %v864
  %v866 = vpop.xlane.xlu0 %865
  %v867 = vsel %vm144, %v844, -inf
  %868 = vmax.xlane.f32.xlu0 %v867
  %v869 = vpop.xlane.xlu0 %868
  %v870 = vsel %vm144, %v847, -inf
  %871 = vmax.xlane.f32.xlu0 %v870
  %v872 = vpop.xlane.xlu0 %871
  %v873 = vsel %vm144, %v850, -inf
  %874 = vmax.xlane.f32.xlu0 %v873
  %v875 = vpop.xlane.xlu0 %874
  %v876 = vsel %vm144, %v853, -inf
  %877 = vmax.xlane.f32.xlu0 %v876
  %v878 = vpop.xlane.xlu0 %877
  %v879 = vsel %vm144, %v856, -inf
  %880 = vmax.xlane.f32.xlu0 %v879
  %v881 = vpop.xlane.xlu0 %880
  %v882 = vmax.f32 %v860, %v872
  %v883 = vmax.f32 %v863, %v875
  %v884 = vmax.f32 %v866, %v878
  %v885 = vmax.f32 %v869, %v881
  %v886 = vmax.f32 %v882, %v883
  %v887 = vmax.f32 %v884, %v885
  %v888 = vmax.f32 %v886, %v887
  %v889 = vrot.slane %v888, 4
  %v890 = vmax.f32 %v888, %v889
  %v891 = vrot.slane %v890, 2
  %v892 = vmax.f32 %v890, %v891
  %v893 = vrot.slane %v892, 1
  %v894 = vmax.f32 %v892, %v893
  %v895 = vrcp.pop %v894
  %v896 = vmul.f32 %v894, %v895
  %v897 = vsub.f32 1.0, %v896
  %v898 = vmul.f32 %v895, %v897
  %v899 = vadd.f32 %v895, %v898
  %vm900 = vweird.f32 %v894
  %vm901 = vweird.f32 %v895
  %vm902 = vmor %vm900, %vm901
  %v903 = vsel %vm902, %v895, %v899
  %v904 = vand.u32 2147483647, %v894
  %vm905 = vcmp.eq.f32.partialorder %v904, 8.507059e+37
  %v906 = vand.u32 %v894, 2147483648
  %v907 = vor.u32 1.1754944e-38, %v906
  %v908 = vsel %vm905, %v907, %v903
  %v909 = vmul.f32 1.0, %v908
  %v910 = vmul.f32 %v835, %v909
  %v911 = vmul.f32 %v838, %v909
  %v912 = vmul.f32 %v841, %v909
  %v913 = vmul.f32 %v844, %v909
  %v914 = vmul.f32 %v847, %v909
  %v915 = vmul.f32 %v850, %v909
  %v916 = vmul.f32 %v853, %v909
  %v917 = vmul.f32 %v856, %v909
  %v918 = vmax.f32 %v910, 1.1920929e-07
  %v919 = vmax.f32 %v911, 1.1920929e-07
  %v920 = vmax.f32 %v912, 1.1920929e-07
  %v921 = vmax.f32 %v913, 1.1920929e-07
  %v922 = vmax.f32 %v914, 1.1920929e-07
  %v923 = vmax.f32 %v915, 1.1920929e-07
  %v924 = vmax.f32 %v916, 1.1920929e-07
  %v925 = vmax.f32 %v917, 1.1920929e-07
  %v926 = vmin.f32 %v918, 0.9999999
  %v927 = vmin.f32 %v919, 0.9999999
  %v928 = vmin.f32 %v920, 0.9999999
  %v929 = vmin.f32 %v921, 0.9999999
  %v930 = vmin.f32 %v922, 0.9999999
  %v931 = vmin.f32 %v923, 0.9999999
  %v932 = vmin.f32 %v924, 0.9999999
  %v933 = vmin.f32 %v925, 0.9999999
  %v934 = vmax.f32 %v22, 1.1920929e-07
  %v935 = vmax.f32 %v23, 1.1920929e-07
  %v936 = vmax.f32 %v24, 1.1920929e-07
  %v937 = vmax.f32 %v25, 1.1920929e-07
  %v938 = vmax.f32 %v26, 1.1920929e-07
  %v939 = vmax.f32 %v27, 1.1920929e-07
  %v940 = vmax.f32 %v28, 1.1920929e-07
  %v941 = vmax.f32 %v29, 1.1920929e-07
  %v942 = vmin.f32 %v934, 0.9999999
  %v943 = vmin.f32 %v935, 0.9999999
  %v944 = vmin.f32 %v936, 0.9999999
  %v945 = vmin.f32 %v937, 0.9999999
  %v946 = vmin.f32 %v938, 0.9999999
  %v947 = vmin.f32 %v939, 0.9999999
  %v948 = vmin.f32 %v940, 0.9999999
  %v949 = vmin.f32 %v941, 0.9999999
  %v950 = vsub.f32 1.0, %v942
  %v951 = vsub.f32 1.0, %v943
  %v952 = vsub.f32 1.0, %v944
  %v953 = vsub.f32 1.0, %v945
  %v954 = vsub.f32 1.0, %v946
  %v955 = vsub.f32 1.0, %v947
  %v956 = vsub.f32 1.0, %v948
  %v957 = vsub.f32 1.0, %v949
  %966 = vrot.lane.b32.xlu0 %v950, 64
  %v967 = vpop.permute.xlu0 %966
  %968 = vrot.lane.b32.xlu0 %v951, 64
  %v969 = vpop.permute.xlu0 %968
  %970 = vrot.lane.b32.xlu0 %v952, 64
  %v971 = vpop.permute.xlu0 %970
  %972 = vrot.lane.b32.xlu0 %v953, 64
  %v973 = vpop.permute.xlu0 %972
  %974 = vrot.lane.b32.xlu0 %v954, 64
  %v975 = vpop.permute.xlu0 %974
  %976 = vrot.lane.b32.xlu0 %v955, 64
  %v977 = vpop.permute.xlu0 %976
  %978 = vrot.lane.b32.xlu0 %v956, 64
  %v979 = vpop.permute.xlu0 %978
  %980 = vrot.lane.b32.xlu0 %v957, 64
  %v981 = vpop.permute.xlu0 %980
  %vm990 = vcmp.ge.f32.partialorder %v926, %v967
  %vm991 = vcmp.ge.f32.partialorder %v927, %v969
  %vm992 = vcmp.ge.f32.partialorder %v928, %v971
  %vm993 = vcmp.ge.f32.partialorder %v929, %v973
  %vm994 = vcmp.ge.f32.partialorder %v930, %v975
  %vm995 = vcmp.ge.f32.partialorder %v931, %v977
  %vm996 = vcmp.ge.f32.partialorder %v932, %v979
  %vm997 = vcmp.ge.f32.partialorder %v933, %v981
  %v998 = vsel %vm990, 1, 0
  %v999 = vsel %vm991, 1, 0
  %v1000 = vsel %vm992, 1, 0
  %v1001 = vsel %vm993, 1, 0
  %v1002 = vsel %vm994, 1, 0
  %v1003 = vsel %vm995, 1, 0
  %v1004 = vsel %vm996, 1, 0
  %v1005 = vsel %vm997, 1, 0
  %v1006 = vcvt.s32.f32 %v998
  %v1007 = vcvt.s32.f32 %v999
  %v1008 = vcvt.s32.f32 %v1000
  %v1009 = vcvt.s32.f32 %v1001
  %v1010 = vcvt.s32.f32 %v1002
  %v1011 = vcvt.s32.f32 %v1003
  %v1012 = vcvt.s32.f32 %v1004
  %v1013 = vcvt.s32.f32 %v1005
  %v1014 = vsub.f32 1.0, %v70
  %v1015 = vsub.f32 1.0, %v71
  %v1016 = vsub.f32 1.0, %v72
  %v1017 = vsub.f32 1.0, %v73
  %v1018 = vsub.f32 1.0, %v74
  %v1019 = vsub.f32 1.0, %v75
  %v1020 = vsub.f32 1.0, %v76
  %v1021 = vsub.f32 1.0, %v77
  %v1022 = vmul.f32 %v1006, %v1014
  %v1023 = vmul.f32 %v1007, %v1015
  %v1024 = vmul.f32 %v1008, %v1016
  %v1025 = vmul.f32 %v1009, %v1017
  %v1026 = vmul.f32 %v1010, %v1018
  %v1027 = vmul.f32 %v1011, %v1019
  %v1028 = vmul.f32 %v1012, %v1020
  %v1029 = vmul.f32 %v1013, %v1021
  %v1030 = vadd.f32 %v1022, %v70
  %v1031 = vadd.f32 %v1023, %v71
  %v1032 = vadd.f32 %v1024, %v72
  %v1033 = vadd.f32 %v1025, %v73
  %v1034 = vadd.f32 %v1026, %v74
  %v1035 = vadd.f32 %v1027, %v75
  %v1036 = vadd.f32 %v1028, %v76
  %v1037 = vadd.f32 %v1029, %v77
  %v1038 = vsel %vm144, %v1030, 0.0
  %1039 = vadd.xlane.f32.xlu0 %v1038
  %v1040 = vpop.xlane.xlu0 %1039
  %v1041 = vsel %vm144, %v1031, 0.0
  %1042 = vadd.xlane.f32.xlu0 %v1041
  %v1043 = vpop.xlane.xlu0 %1042
  %v1044 = vsel %vm144, %v1032, 0.0
  %1045 = vadd.xlane.f32.xlu0 %v1044
  %v1046 = vpop.xlane.xlu0 %1045
  %v1047 = vsel %vm144, %v1033, 0.0
  %1048 = vadd.xlane.f32.xlu0 %v1047
  %v1049 = vpop.xlane.xlu0 %1048
  %v1050 = vsel %vm144, %v1034, 0.0
  %1051 = vadd.xlane.f32.xlu0 %v1050
  %v1052 = vpop.xlane.xlu0 %1051
  %v1053 = vsel %vm144, %v1035, 0.0
  %1054 = vadd.xlane.f32.xlu0 %v1053
  %v1055 = vpop.xlane.xlu0 %1054
  %v1056 = vsel %vm144, %v1036, 0.0
  %1057 = vadd.xlane.f32.xlu0 %v1056
  %v1058 = vpop.xlane.xlu0 %1057
  %v1059 = vsel %vm144, %v1037, 0.0
  %1060 = vadd.xlane.f32.xlu0 %v1059
  %v1061 = vpop.xlane.xlu0 %1060
  %v1062 = vrsqrt.pop %v1040
  %v1063 = vmul.f32 %v1062, %v1040
  %v1064 = vmul.f32 %v1063, %v1062
  %v1065 = vmul.f32 0.5, %v1064
  %v1066 = vsub.f32 1.5, %v1065
  %v1067 = vmul.f32 %v1062, %v1066
  %vm1068 = vweird.f32 %v1040
  %vm1069 = vweird.f32 %v1062
  %vm1070 = vmor %vm1068, %vm1069
  %v1071 = vsel %vm1070, %v1062, %v1067
  %v1072 = vrsqrt.pop %v1043
  %v1073 = vmul.f32 %v1072, %v1043
  %v1074 = vmul.f32 %v1073, %v1072
  %v1075 = vmul.f32 0.5, %v1074
  %v1076 = vsub.f32 1.5, %v1075
  %v1077 = vmul.f32 %v1072, %v1076
  %vm1078 = vweird.f32 %v1043
  %vm1079 = vweird.f32 %v1072
  %vm1080 = vmor %vm1078, %vm1079
  %v1081 = vsel %vm1080, %v1072, %v1077
  %v1082 = vrsqrt.pop %v1046
  %v1083 = vmul.f32 %v1082, %v1046
  %v1084 = vmul.f32 %v1083, %v1082
  %v1085 = vmul.f32 0.5, %v1084
  %v1086 = vsub.f32 1.5, %v1085
  %v1087 = vmul.f32 %v1082, %v1086
  %vm1088 = vweird.f32 %v1046
  %vm1089 = vweird.f32 %v1082
  %vm1090 = vmor %vm1088, %vm1089
  %v1091 = vsel %vm1090, %v1082, %v1087
  %v1092 = vrsqrt.pop %v1049
  %v1093 = vmul.f32 %v1092, %v1049
  %v1094 = vmul.f32 %v1093, %v1092
  %v1095 = vmul.f32 0.5, %v1094
  %v1096 = vsub.f32 1.5, %v1095
  %v1097 = vmul.f32 %v1092, %v1096
  %vm1098 = vweird.f32 %v1049
  %vm1099 = vweird.f32 %v1092
  %vm1100 = vmor %vm1098, %vm1099
  %v1101 = vsel %vm1100, %v1092, %v1097
  %v1102 = vrsqrt.pop %v1052
  %v1103 = vmul.f32 %v1102, %v1052
  %v1104 = vmul.f32 %v1103, %v1102
  %v1105 = vmul.f32 0.5, %v1104
  %v1106 = vsub.f32 1.5, %v1105
  %v1107 = vmul.f32 %v1102, %v1106
  %vm1108 = vweird.f32 %v1052
  %vm1109 = vweird.f32 %v1102
  %vm1110 = vmor %vm1108, %vm1109
  %v1111 = vsel %vm1110, %v1102, %v1107
  %v1112 = vrsqrt.pop %v1055
  %v1113 = vmul.f32 %v1112, %v1055
  %v1114 = vmul.f32 %v1113, %v1112
  %v1115 = vmul.f32 0.5, %v1114
  %v1116 = vsub.f32 1.5, %v1115
  %v1117 = vmul.f32 %v1112, %v1116
  %vm1118 = vweird.f32 %v1055
  %vm1119 = vweird.f32 %v1112
  %vm1120 = vmor %vm1118, %vm1119
  %v1121 = vsel %vm1120, %v1112, %v1117
  %v1122 = vrsqrt.pop %v1058
  %v1123 = vmul.f32 %v1122, %v1058
  %v1124 = vmul.f32 %v1123, %v1122
  %v1125 = vmul.f32 0.5, %v1124
  %v1126 = vsub.f32 1.5, %v1125
  %v1127 = vmul.f32 %v1122, %v1126
  %vm1128 = vweird.f32 %v1058
  %vm1129 = vweird.f32 %v1122
  %vm1130 = vmor %vm1128, %vm1129
  %v1131 = vsel %vm1130, %v1122, %v1127
  %v1132 = vrsqrt.pop %v1061
  %v1133 = vmul.f32 %v1132, %v1061
  %v1134 = vmul.f32 %v1133, %v1132
  %v1135 = vmul.f32 0.5, %v1134
  %v1136 = vsub.f32 1.5, %v1135
  %v1137 = vmul.f32 %v1132, %v1136
  %vm1138 = vweird.f32 %v1061
  %vm1139 = vweird.f32 %v1132
  %vm1140 = vmor %vm1138, %vm1139
  %v1141 = vsel %vm1140, %v1132, %v1137
  %v1142 = vadd.f32 %v1038, %v1041
  %v1143 = vadd.f32 %v1142, %v1044
  %v1144 = vadd.f32 %v1143, %v1047
  %v1145 = vadd.f32 %v1144, %v1050
  %v1146 = vadd.f32 %v1145, %v1053
  %v1147 = vadd.f32 %v1146, %v1056
  %v1148 = vadd.f32 %v1147, %v1059
  %v1149 = vrot.slane %v1148, 4
  %v1150 = vadd.f32 %v1148, %v1149
  %v1151 = vrot.slane %v1150, 2
  %v1152 = vadd.f32 %v1150, %v1151
  %v1153 = vrot.slane %v1152, 1
  %v1154 = vadd.f32 %v1152, %v1153
  %v1155 = vrsqrt.pop %v1154
  %v1156 = vmul.f32 %v1155, %v1154
  %v1157 = vmul.f32 %v1156, %v1155
  %v1158 = vmul.f32 0.5, %v1157
  %v1159 = vsub.f32 1.5, %v1158
  %v1160 = vmul.f32 %v1155, %v1159
  %vm1161 = vweird.f32 %v1154
  %vm1162 = vweird.f32 %v1155
  %vm1163 = vmor %vm1161, %vm1162
  %v1164 = vsel %vm1163, %v1155, %v1160
  %v1165 = vmul.f32 %v1071, %v1030
  %v1166 = vmul.f32 %v1081, %v1031
  %v1167 = vmul.f32 %v1091, %v1032
  %v1168 = vmul.f32 %v1101, %v1033
  %v1169 = vmul.f32 %v1111, %v1034
  %v1170 = vmul.f32 %v1121, %v1035
  %v1171 = vmul.f32 %v1131, %v1036
  %v1172 = vmul.f32 %v1141, %v1037
  %v1173 = vmul.f32 %v1165, %v1164
  %v1174 = vmul.f32 %v1166, %v1164
  %v1175 = vmul.f32 %v1167, %v1164
  %v1176 = vmul.f32 %v1168, %v1164
  %v1177 = vmul.f32 %v1169, %v1164
  %v1178 = vmul.f32 %v1170, %v1164
  %v1179 = vmul.f32 %v1171, %v1164
  %v1180 = vmul.f32 %v1172, %v1164
  %v1181 = vperm.slane %v42, 0
  %1190 = vrot.lane.b32.xlu0 %v121, 96
  %v1191 = vpop.permute.xlu0 %1190
  %1192 = vrot.lane.b32.xlu0 %v124, 96
  %v1193 = vpop.permute.xlu0 %1192
  %1194 = vrot.lane.b32.xlu0 %v127, 96
  %v1195 = vpop.permute.xlu0 %1194
  %1196 = vrot.lane.b32.xlu0 %v130, 96
  %v1197 = vpop.permute.xlu0 %1196
  %1198 = vrot.lane.b32.xlu0 %v133, 96
  %v1199 = vpop.permute.xlu0 %1198
  %1200 = vrot.lane.b32.xlu0 %v136, 96
  %v1201 = vpop.permute.xlu0 %1200
  %1202 = vrot.lane.b32.xlu0 %v139, 96
  %v1203 = vpop.permute.xlu0 %1202
  %1204 = vrot.lane.b32.xlu0 %v142, 96
  %v1205 = vpop.permute.xlu0 %1204
  %v1215 = vsel %vm144, %v1173, 0
  %v1218 = vsel %vm144, %v1174, 0
  %v1221 = vsel %vm144, %v1175, 0
  %v1224 = vsel %vm144, %v1176, 0
  %v1227 = vsel %vm144, %v1177, 0
  %v1230 = vsel %vm144, %v1178, 0
  %v1233 = vsel %vm144, %v1179, 0
  %v1236 = vsel %vm144, %v1180, 0
  %1238 = vmatpush.msra.mxu0 0.0
  %1239 = vmatpush.msra.mxu0 0.0
  %1240 = vmatpush.msra.mxu0 0.0
  %1241 = vmatpush.msra.mxu0 0.0
  %1242 = vmatpush.msra.mxu0 0.0
  %1243 = vmatpush.msra.mxu0 0.0
  %1244 = vmatpush.msra.mxu0 0.0
  %1245 = vmatpush.msra.mxu0 0.0
  %1246 = vmatpush.msra.mxu0 %v1205
  %1247 = vmatpush.msra.mxu0 %v1203
  %1248 = vmatpush.msra.mxu0 %v1201
  %1249 = vmatpush.msra.mxu0 %v1199
  %1250 = vmatpush.msra.mxu0 %v1197
  %1251 = vmatpush.msra.mxu0 %v1195
  %1252 = vmatpush.msra.mxu0 %v1193
  %1253 = vmatpush.msra.mxu0 %v1191
  %1254 = vmatmul.f32.gmra.mxu0 %v1215
  %v1255 = vpop.f32.mrf.mxu0
  %v1256 = vadd.f32 %v1181, %v1255
  %1257 = vmatmul.f32.gmra.mxu0 %v1218
  %v1258 = vpop.f32.mrf.mxu0
  %v1259 = vadd.f32 %v1181, %v1258
  %1260 = vmatmul.f32.gmra.mxu0 %v1221
  %v1261 = vpop.f32.mrf.mxu0
  %v1262 = vadd.f32 %v1181, %v1261
  %1263 = vmatmul.f32.gmra.mxu0 %v1224
  %v1264 = vpop.f32.mrf.mxu0
  %v1265 = vadd.f32 %v1181, %v1264
  %1266 = vmatmul.f32.gmra.mxu0 %v1227
  %v1267 = vpop.f32.mrf.mxu0
  %v1268 = vadd.f32 %v1181, %v1267
  %1269 = vmatmul.f32.gmra.mxu0 %v1230
  %v1270 = vpop.f32.mrf.mxu0
  %v1271 = vadd.f32 %v1181, %v1270
  %1272 = vmatmul.f32.gmra.mxu0 %v1233
  %v1273 = vpop.f32.mrf.mxu0
  %v1274 = vadd.f32 %v1181, %v1273
  %1275 = vmatmul.f32.gmra.mxu0 %v1236
  %v1276 = vpop.f32.mrf.mxu0
  %v1277 = vadd.f32 %v1181, %v1276
  %1278 = vdwg.mxu0
  %v1279 = vmax.f32 %v1256, 0.0
  %v1280 = vmax.f32 %v1259, 0.0
  %v1281 = vmax.f32 %v1262, 0.0
  %v1282 = vmax.f32 %v1265, 0.0
  %v1283 = vmax.f32 %v1268, 0.0
  %v1284 = vmax.f32 %v1271, 0.0
  %v1285 = vmax.f32 %v1274, 0.0
  %v1286 = vmax.f32 %v1277, 0.0
  %v1288 = vsel %vm78, %v1279, 0
  %v1291 = vsel %vm78, %v1280, 0
  %v1294 = vsel %vm78, %v1281, 0
  %v1297 = vsel %vm78, %v1282, 0
  %v1300 = vsel %vm78, %v1283, 0
  %v1303 = vsel %vm78, %v1284, 0
  %v1306 = vsel %vm78, %v1285, 0
  %v1309 = vsel %vm78, %v1286, 0
  %1311 = vmatpush.msra.mxu0 0.0
  %1312 = vmatpush.msra.mxu0 0.0
  %1313 = vmatpush.msra.mxu0 0.0
  %1314 = vmatpush.msra.mxu0 0.0
  %1315 = vmatpush.msra.mxu0 0.0
  %1316 = vmatpush.msra.mxu0 0.0
  %1317 = vmatpush.msra.mxu0 0.0
  %1318 = vmatpush.msra.mxu0 0.0
  %1319 = vmatpush.msra.mxu0 0.0
  %1320 = vmatpush.msra.mxu0 0.0
  %1321 = vmatpush.msra.mxu0 0.0
  %1322 = vmatpush.msra.mxu0 0.0
  %1323 = vmatpush.msra.mxu0 %v41
  %1324 = vmatpush.msra.mxu0 %v40
  %1325 = vmatpush.msra.mxu0 %v39
  %1326 = vmatpush.msra.mxu0 %v38
  %1327 = vmatmul.f32.gmra.mxu0 %v1288
  %v1328 = vpop.f32.mrf.mxu0
  %v1329 = vadd.f32 0.0, %v1328
  %1330 = vmatmul.f32.gmra.mxu0 %v1291
  %v1331 = vpop.f32.mrf.mxu0
  %v1332 = vadd.f32 0.0, %v1331
  %1333 = vmatmul.f32.gmra.mxu0 %v1294
  %v1334 = vpop.f32.mrf.mxu0
  %v1335 = vadd.f32 0.0, %v1334
  %1336 = vmatmul.f32.gmra.mxu0 %v1297
  %v1337 = vpop.f32.mrf.mxu0
  %v1338 = vadd.f32 0.0, %v1337
  %1339 = vmatmul.f32.gmra.mxu0 %v1300
  %v1340 = vpop.f32.mrf.mxu0
  %v1341 = vadd.f32 0.0, %v1340
  %1342 = vmatmul.f32.gmra.mxu0 %v1303
  %v1343 = vpop.f32.mrf.mxu0
  %v1344 = vadd.f32 0.0, %v1343
  %1345 = vmatmul.f32.gmra.mxu0 %v1306
  %v1346 = vpop.f32.mrf.mxu0
  %v1347 = vadd.f32 0.0, %v1346
  %1348 = vmatmul.f32.gmra.mxu0 %v1309
  %v1349 = vpop.f32.mrf.mxu0
  %v1350 = vadd.f32 0.0, %v1349
  %1351 = vdwg.mxu0
  %v1352 = vperm.slane %v42, 1
  %1353 = vmatpush.msra.mxu0 0.0
  %1354 = vmatpush.msra.mxu0 0.0
  %1355 = vmatpush.msra.mxu0 0.0
  %1356 = vmatpush.msra.mxu0 0.0
  %1357 = vmatpush.msra.mxu0 0.0
  %1358 = vmatpush.msra.mxu0 0.0
  %1359 = vmatpush.msra.mxu0 0.0
  %1360 = vmatpush.msra.mxu0 0.0
  %1361 = vmatpush.msra.mxu0 %v1350
  %1362 = vmatpush.msra.mxu0 %v1347
  %1363 = vmatpush.msra.mxu0 %v1344
  %1364 = vmatpush.msra.mxu0 %v1341
  %1365 = vmatpush.msra.mxu0 %v1338
  %1366 = vmatpush.msra.mxu0 %v1335
  %1367 = vmatpush.msra.mxu0 %v1332
  %1368 = vmatpush.msra.mxu0 %v1329
  %1369 = vmatmul.f32.gmra.mxu0 %v1215
  %v1370 = vpop.f32.mrf.mxu0
  %v1371 = vadd.f32 %v1352, %v1370
  %1372 = vmatmul.f32.gmra.mxu0 %v1218
  %v1373 = vpop.f32.mrf.mxu0
  %v1374 = vadd.f32 %v1352, %v1373
  %1375 = vmatmul.f32.gmra.mxu0 %v1221
  %v1376 = vpop.f32.mrf.mxu0
  %v1377 = vadd.f32 %v1352, %v1376
  %1378 = vmatmul.f32.gmra.mxu0 %v1224
  %v1379 = vpop.f32.mrf.mxu0
  %v1380 = vadd.f32 %v1352, %v1379
  %1381 = vmatmul.f32.gmra.mxu0 %v1227
  %v1382 = vpop.f32.mrf.mxu0
  %v1383 = vadd.f32 %v1352, %v1382
  %1384 = vmatmul.f32.gmra.mxu0 %v1230
  %v1385 = vpop.f32.mrf.mxu0
  %v1386 = vadd.f32 %v1352, %v1385
  %1387 = vmatmul.f32.gmra.mxu0 %v1233
  %v1388 = vpop.f32.mrf.mxu0
  %v1389 = vadd.f32 %v1352, %v1388
  %1390 = vmatmul.f32.gmra.mxu0 %v1236
  %v1391 = vpop.f32.mrf.mxu0
  %v1392 = vadd.f32 %v1352, %v1391
  %1393 = vdwg.mxu0
  %1394 = vst [vmem:[%s3] sm:$0xff] %v1371
  %1395 = vst [vmem:[%s3 + $0x8] sm:$0xff] %v1374
  %1396 = vst [vmem:[%s3 + $0x10] sm:$0xff] %v1377
  %1397 = vst [vmem:[%s3 + $0x18] sm:$0xff] %v1380
  %1398 = vst [vmem:[%s3 + $0x20] sm:$0xff] %v1383
  %1399 = vst [vmem:[%s3 + $0x28] sm:$0xff] %v1386
  %1400 = vst [vmem:[%s3 + $0x30] sm:$0xff] %v1389
  %1401 = vst [vmem:[%s3 + $0x38] sm:$0xff] %v1392
  %1402 = vst.msk [vmem:[%s3] sm:$0xff] %vm144, %v835
  %1403 = vst.msk [vmem:[%s3 + $0x8] sm:$0xff] %vm144, %v838
  %1404 = vst.msk [vmem:[%s3 + $0x10] sm:$0xff] %vm144, %v841
  %1405 = vst.msk [vmem:[%s3 + $0x18] sm:$0xff] %vm144, %v844
  %1406 = vst.msk [vmem:[%s3 + $0x20] sm:$0xff] %vm144, %v847
  %1407 = vst.msk [vmem:[%s3 + $0x28] sm:$0xff] %vm144, %v850
  %1408 = vst.msk [vmem:[%s3 + $0x30] sm:$0xff] %vm144, %v853
  %1409 = vst.msk [vmem:[%s3 + $0x38] sm:$0xff] %vm144, %v856
  // Predicated region
  $region14: #{gaug_forward.1} parent=0 // pred_check
    _
  $region15: #{gaug_forward.1} parent=0 // pred_check_branch
    %1411 = sbr.rel (0) target = $region17
  $region16: #{gaug_forward.1} parent=0 // pred_region
    _
  $region17: #{gaug_forward.1} parent=0 // pred_fallthru
    _
  // Predicated region
  $region18: #{gaug_forward.1} parent=0 // pred_check
    _
  $region19: #{gaug_forward.1} parent=0 // pred_check_branch
    %1413 = sbr.rel (0) target = $region21
  $region20: #{gaug_forward.1} parent=0 // pred_region
    _
  $region21: #{gaug_forward.1} parent=0 // pred_fallthru
    _

</llo_original>
